<compile_context>
chip_gen: v7x
topology: tpu7x:2x2x1
jax: 0.10.0
libtpu: 0.0.40
codegen_flags: <defaults>
</compile_context>

<pallas_src>
import functools

import jax
import jax.numpy as jnp
import numpy as np
from jax import lax
from jax.experimental import pallas as pl
from jax.experimental.pallas import tpu as pltpu


def _pick_tile(size, cap):
    """Largest divisor of `size` that is <= cap (never exceeds the axis).

    TODO(synk): for prime-ish axes this degenerates to small tiles; a cdiv grid
    with a masked tail (padding keys get -1e9 for free via the additive mask)
    would be the fully general fix.
    """
    if size <= cap:
        return size
    t = cap
    while size % t != 0:
        t -= 1
    return t


# --------------------------------------------------------------------------
# Kernel 1: row x N-tiled linear  (x @ W + b), lane-dense output.
#   Used for the Q/K/V input projections.
# --------------------------------------------------------------------------
def _linear_kernel(x_ref, w_ref, b_ref, o_ref):
    o_ref[...] = (jnp.dot(x_ref[...], w_ref[...],
                          preferred_element_type=jnp.float32)
                  + b_ref[...]).astype(o_ref.dtype)


def _linear(x2d, w_t, b, row_cap, col_cap, out_dtype):
    M, d_in = x2d.shape
    d_out = w_t.shape[1]
    tm = _pick_tile(M, row_cap)
    tn = _pick_tile(d_out, col_cap)
    nm, nn = M // tm, d_out // tn
    # Row axis innermost: the (d_in, tn) weight / (1, tn) bias blocks stay
    # resident across the inner row loop (Pallas skips the repeated DMA).
    # TODO(synk): at very large d_in*tn, mark weight/bias with
    # pipeline_mode=pl.Buffered(1) to halve their VMEM footprint.
    return pl.pallas_call(
        _linear_kernel,
        out_shape=jax.ShapeDtypeStruct((M, d_out), out_dtype),
        grid_spec=pltpu.PrefetchScalarGridSpec(
            num_scalar_prefetch=0,
            grid=(nn, nm),
            in_specs=[
                pl.BlockSpec((tm, d_in), lambda j, i: (i, 0)),
                pl.BlockSpec((d_in, tn), lambda j, i: (0, j)),
                pl.BlockSpec((1, tn), lambda j, i: (0, j)),
            ],
            out_specs=pl.BlockSpec((tm, tn), lambda j, i: (i, j)),
        ),
        compiler_params=pltpu.CompilerParams(
            dimension_semantics=("parallel", "parallel")),
    )(x2d, w_t, b)


# --------------------------------------------------------------------------
# Kernel 2: flash-style attention core, one head per grid step.
#   qp/kp/vp: (B*S, d_model) bf16 lane-dense projection outputs.
#   Head split is done by the BlockSpec column slice (index h on the last axis).
#   mask: (B, 1, Sk) additive f32 (0 keep / -1e9 masked).
#   Output: head-major (H, B*Sq, d_k) bf16 (no epilogue transpose).
# --------------------------------------------------------------------------
def _flash_attn_kernel(q_ref, k_ref, v_ref, mask_ref, o_ref,
                       m_sc, l_sc, acc_sc):
    ki = pl.program_id(3)

    @pl.when(ki == 0)
    def _():
        m_sc[...] = jnp.full_like(m_sc, -jnp.inf)
        l_sc[...] = jnp.zeros_like(l_sc)
        acc_sc[...] = jnp.zeros_like(acc_sc)

    # (tq, d_k) x (tk, d_k)^T -> (tq, tk) on the MXU, f32 accumulation.
    # The 1/sqrt(d_k) scale is folded into the Q projection weights.
    s = lax.dot_general(q_ref[...], k_ref[...],
                        dimension_numbers=(((1,), (1,)), ((), ())),
                        preferred_element_type=jnp.float32)
    s = s + mask_ref[0]                       # (1, tk) broadcasts over tq

    m_prev = m_sc[...]
    m_new = jnp.maximum(m_prev, s.max(axis=-1, keepdims=True))
    alpha = jnp.exp(m_prev - m_new)
    # TODO(synk): on v6e/v7x a bf16 exp here (~2x EUP throughput) is a further
    # win; kept f32 for portability (v5e has no bf16 EUP) and accuracy.
    p = jnp.exp(s - m_new)
    l_sc[...] = alpha * l_sc[...] + p.sum(axis=-1, keepdims=True)
    acc_sc[...] = alpha * acc_sc[...] + jnp.dot(
        p.astype(v_ref.dtype), v_ref[...], preferred_element_type=jnp.float32)
    m_sc[...] = m_new

    @pl.when(ki == pl.num_programs(3) - 1)
    def _():
        ctx = acc_sc[...] * pl.reciprocal(l_sc[...], approx=True)  # (tq, d_k)
        o_ref[...] = ctx[None, :, :].astype(o_ref.dtype)


def _flash_attention(qp, kp, vp, addmask, B, Sq, Sk, H, d_k,
                     q_cap, kv_cap, out_dtype):
    tq = _pick_tile(Sq, q_cap)
    tk = _pick_tile(Sk, kv_cap)
    nq = Sq // tq
    nk = Sk // tk
    return pl.pallas_call(
        _flash_attn_kernel,
        out_shape=jax.ShapeDtypeStruct((H, B * Sq, d_k), out_dtype),
        grid_spec=pltpu.PrefetchScalarGridSpec(
            num_scalar_prefetch=0,
            grid=(B, H, nq, nk),
            in_specs=[
                # Per-head column slices of the lane-dense projection outputs:
                # the DMA engine does the head split, no in-kernel relayout.
                pl.BlockSpec((tq, d_k), lambda b, h, qi, ki: (b * nq + qi, h)),
                pl.BlockSpec((tk, d_k), lambda b, h, qi, ki: (b * nk + ki, h)),
                pl.BlockSpec((tk, d_k), lambda b, h, qi, ki: (b * nk + ki, h)),
                pl.BlockSpec((1, 1, tk), lambda b, h, qi, ki: (b, 0, ki)),
            ],
            out_specs=pl.BlockSpec((1, tq, d_k),
                                   lambda b, h, qi, ki: (h, b * nq + qi, 0)),
            scratch_shapes=[
                pltpu.VMEM((tq, 1), jnp.float32),     # running max
                pltpu.VMEM((tq, 1), jnp.float32),     # running sum
                pltpu.VMEM((tq, d_k), jnp.float32),   # output accumulator
            ],
        ),
        compiler_params=pltpu.CompilerParams(
            dimension_semantics=("parallel", "parallel", "parallel",
                                 "arbitrary")),
    )(qp, kp, vp, addmask)


# --------------------------------------------------------------------------
# Kernel 3: head-aware output projection.
#   ctx: (H, B*Sq, d_k), Wo: (H, d_k, Dq).  The head merge is just the
#   reduction (K) axis of this matmul -- accumulated in f32 VMEM scratch.
# --------------------------------------------------------------------------
def _headmerge_linear_kernel(ctx_ref, w_ref, b_ref, o_ref, acc_ref):
    h = pl.program_id(2)

    @pl.when(h == 0)
    def _():
        acc_ref[...] = jnp.zeros_like(acc_ref)

    acc_ref[...] += jnp.dot(ctx_ref[0], w_ref[0],
                            preferred_element_type=jnp.float32)

    @pl.when(h == pl.num_programs(2) - 1)
    def _():
        o_ref[...] = (acc_ref[...] + b_ref[...]).astype(o_ref.dtype)


def _headmerge_linear(ctx_h, wo_h, bo, row_cap, col_cap, out_dtype):
    H, M, d_k = ctx_h.shape
    d_out = wo_h.shape[2]
    tm = _pick_tile(M, row_cap)
    tn = _pick_tile(d_out, col_cap)
    nm, nn = M // tm, d_out // tn
    return pl.pallas_call(
        _headmerge_linear_kernel,
        out_shape=jax.ShapeDtypeStruct((M, d_out), out_dtype),
        grid_spec=pltpu.PrefetchScalarGridSpec(
            num_scalar_prefetch=0,
            grid=(nm, nn, H),
            in_specs=[
                pl.BlockSpec((1, tm, d_k), lambda i, j, h: (h, i, 0)),
                pl.BlockSpec((1, d_k, tn), lambda i, j, h: (h, 0, j)),
                pl.BlockSpec((1, tn), lambda i, j, h: (0, j)),
            ],
            out_specs=pl.BlockSpec((tm, tn), lambda i, j, h: (i, j)),
            scratch_shapes=[pltpu.VMEM((tm, tn), jnp.float32)],
        ),
        compiler_params=pltpu.CompilerParams(
            dimension_semantics=("parallel", "parallel", "arbitrary")),
    )(ctx_h, wo_h, bo)


# --------------------------------------------------------------------------
# Wrapper: full MultiheadedAttention forward.
# --------------------------------------------------------------------------
def multiheaded_attention(Q, K, V, mask, params, H, *,
                          q_tile=256, kv_tile=256, row_tile=256, col_tile=512,
                          compute_dtype=jnp.bfloat16):
    """Q:(B,Sq,Dq) K:(B,Sk,Dk) V:(B,Sv,Dv) mask:(B,1,Sk) -> (B,Sq,Dq).

    On v5e prefer q_tile=128 (128x128 MXU, tighter VMEM); on v7x keep
    kv_tile <= 256 and col_tile <= 1024 unless vmem_limit_bytes is raised.
    """
    B, Sq, Dq = Q.shape
    _, Sk, Dk = K.shape
    _, Sv, Dv = V.shape
    wq, bq, wk, bk, wv, bv, wo, bo = params
    d_model = wq.shape[0]
    d_k = d_model // H
    assert d_model % H == 0
    assert Sk == Sv
    # The mask BlockSpec assumes the module's (B, 1, Sk) key-padding mask.
    assert mask.shape == (B, 1, Sk), "mask must be (B, 1, Sk)"
    scale = 1.0 / float(np.sqrt(d_k))

    # Pre-transposed (in, out) bf16 weights; fold 1/sqrt(d_k) into the Q
    # projection (scaled in f32 *before* the bf16 cast).
    wq_t = (wq.T * scale).astype(compute_dtype)
    bq_s = (bq * scale).astype(jnp.float32)
    wk_t = wk.T.astype(compute_dtype)
    wv_t = wv.T.astype(compute_dtype)
    # Head-aware output-projection weight: (d_model, Dq) -> (H, d_k, Dq).
    wo_h = wo.T.reshape(H, d_k, Dq).astype(compute_dtype)
    bk_f = bk.astype(jnp.float32)
    bv_f = bv.astype(jnp.float32)
    bo_f = bo.astype(jnp.float32)

    # Additive mask: 0 where kept, -1e9 where masked.  Finite, so a fully
    # masked row yields a uniform distribution instead of the reference's
    # -inf -> NaN path (intentional divergence).
    addmask = (mask.astype(jnp.float32) - 1.0) * jnp.float32(1e9)

    # Batched projections over B*S rows; lane-dense (B*S, d_model) outputs.
    q2d = Q.reshape(B * Sq, Dq).astype(compute_dtype)
    k2d = K.reshape(B * Sk, Dk).astype(compute_dtype)
    v2d = V.reshape(B * Sv, Dv).astype(compute_dtype)

    qp = _linear(q2d, wq_t, bq_s, row_tile, col_tile, compute_dtype)
    kp = _linear(k2d, wk_t, bk_f, row_tile, col_tile, compute_dtype)
    vp = _linear(v2d, wv_t, bv_f, row_tile, col_tile, compute_dtype)

    ctx = _flash_attention(qp, kp, vp, addmask, B, Sq, Sk, H, d_k,
                           q_tile, kv_tile, compute_dtype)   # (H, B*Sq, d_k)

    # TODO(synk): dropout is identity here (dout_p = 0.0); no RNG path needed.
    out = _headmerge_linear(ctx, wo_h, bo_f, row_tile, col_tile, Q.dtype)
    return out.reshape(B, Sq, Dq)


# --------------------------------------------------------------------------
# Pure-JAX f32 reference mirroring the PyTorch forward.
# --------------------------------------------------------------------------
def reference_mha(Q, K, V, mask, params, H):
    wq, bq, wk, bk, wv, bv, wo, bo = params
    B, Sq, _ = Q.shape
    d_model = wq.shape[0]
    d_k = d_model // H
    Qp = Q @ wq.T + bq
    Kp = K @ wk.T + bk
    Vp = V @ wv.T + bv
    Qh = Qp.reshape(B, -1, H, d_k).transpose(0, 2, 1, 3)
    Kh = Kp.reshape(B, -1, H, d_k).transpose(0, 2, 1, 3)
    Vh = Vp.reshape(B, -1, H, d_k).transpose(0, 2, 1, 3)
    scores = jnp.einsum('bhqd,bhkd->bhqk', Qh, Kh) / jnp.sqrt(jnp.float32(d_k))
    scores = jnp.where(mask[:, None, :, :] == 0, -jnp.inf, scores)
    probs = jax.nn.softmax(scores, axis=-1)
    out = jnp.einsum('bhqk,bhkd->bhqd', probs, Vh)
    out = out.transpose(0, 2, 1, 3).reshape(B, Sq, d_model)
    return out @ wo.T + bo


if __name__ == "__main__":
    # Small but lane-granular shapes (d_k = 128 keeps every BlockSpec's last
    # dim either full or a multiple of 128, as the review recommends for any
    # meaningful benchmarking/testing).
    B, Sq, Sk = 2, 16, 256
    d_model_Q, d_model_K, d_model_V = 256, 128, 192
    H = 2
    d_model = d_model_Q          # d_model=None branch in __init__
    d_k = d_model // H

    key = jax.random.PRNGKey(0)
    keys = jax.random.split(key, 12)

    # nn.Linear shapes: weight (out, in); bias kept 2-D (1, out) for TPU layouts.
    wq = jax.random.normal(keys[0], (d_model, d_model_Q), jnp.float32) * 0.1
    bq = jax.random.normal(keys[1], (1, d_model), jnp.float32) * 0.1
    wk = jax.random.normal(keys[2], (d_model, d_model_K), jnp.float32) * 0.1
    bk = jax.random.normal(keys[3], (1, d_model), jnp.float32) * 0.1
    wv = jax.random.normal(keys[4], (d_model, d_model_V), jnp.float32) * 0.1
    bv = jax.random.normal(keys[5], (1, d_model), jnp.float32) * 0.1
    wo = jax.random.normal(keys[6], (d_model_Q, d_model), jnp.float32) * 0.1
    bo = jax.random.normal(keys[7], (1, d_model_Q), jnp.float32) * 0.1
    params = (wq, bq, wk, bk, wv, bv, wo, bo)

    Q = jax.random.normal(keys[8], (B, Sq, d_model_Q), jnp.float32)
    K = jax.random.normal(keys[9], (B, Sk, d_model_K), jnp.float32)
    V = jax.random.normal(keys[10], (B, Sk, d_model_V), jnp.float32)

    # mask (B, 1, Sk): 1 = keep, 0 = masked.  Every query row keeps some keys
    # (fully-masked rows would hit the documented finite-mask divergence).
    mask = jnp.ones((B, 1, Sk), jnp.float32)
    mask = mask.at[1, 0, -64:].set(0.0)

    # Small tiles so the test exercises multi-step grids (2 q tiles, 2 kv
    # steps, 2 column tiles, 2 heads, 2 batches).
    out = multiheaded_attention(Q, K, V, mask, params, H,
                                q_tile=8, kv_tile=128, col_tile=128)
    out = jax.block_until_ready(out)

    ref = reference_mha(Q, K, V, mask, params, H)
    # bf16 MXU operands over 128/256-long contractions -> bf16-level tolerance
    # against the f32 reference.
    np.testing.assert_allclose(np.asarray(out), np.asarray(ref),
                               rtol=5e-2, atol=2e-2)
    print("KERNEL_OK")
</pallas_src>

<mosaic_0001>
module attributes {stable_mosaic.version = 11 : i64} {
  func.func @_linear_kernel(%arg0: i32, %arg1: i32, %arg2: memref<32x256xbf16, #tpu.memory_space<vmem>>, %arg3: memref<256x128xbf16, #tpu.memory_space<vmem>>, %arg4: memref<1x128xf32, #tpu.memory_space<vmem>>, %arg5: memref<32x128xbf16, #tpu.memory_space<vmem>>) attributes {dimension_semantics = [#tpu.dimension_semantics<parallel>, #tpu.dimension_semantics<parallel>], iteration_bounds = array<i64: 2, 1>, scalar_prefetch = 0 : i64, scratch_operands = 0 : i64, tpu.core_type = #tpu.core_type<tc>, window_params = [{transform_indices = @transform_0, window_bounds = array<i64: 32, 256>}, {transform_indices = @transform_1, window_bounds = array<i64: 256, 128>}, {transform_indices = @transform_2, window_bounds = array<i64: 1, 128>}, {transform_indices = @transform_3, window_bounds = array<i64: 32, 128>}]} {
    %c0 = arith.constant 0 : index
    %c0_0 = arith.constant 0 : index
    %0 = vector.load %arg2[%c0, %c0_0] : memref<32x256xbf16, #tpu.memory_space<vmem>>, vector<32x256xbf16>
    %c0_1 = arith.constant 0 : index
    %c0_2 = arith.constant 0 : index
    %1 = vector.load %arg3[%c0_1, %c0_2] : memref<256x128xbf16, #tpu.memory_space<vmem>>, vector<256x128xbf16>
    %cst = arith.constant dense<0.000000e+00> : vector<32x128xf32>
    %2 = tpu.matmul %0, %1, %cst {dimension_numbers = #tpu.dot_dimension_numbers<[1], [0], [0], [1], [0, 0, 1, 1], [], []>} : vector<32x256xbf16>, vector<256x128xbf16>, vector<32x128xf32> -> vector<32x128xf32>
    %c0_3 = arith.constant 0 : index
    %c0_4 = arith.constant 0 : index
    %3 = vector.load %arg4[%c0_3, %c0_4] : memref<1x128xf32, #tpu.memory_space<vmem>>, vector<1x128xf32>
    %4 = vector.broadcast %3 : vector<1x128xf32> to vector<32x128xf32>
    %5 = arith.addf %2, %4 : vector<32x128xf32>
    %6 = arith.truncf %5 : vector<32x128xf32> to vector<32x128xbf16>
    %c0_5 = arith.constant 0 : index
    %c0_6 = arith.constant 0 : index
    %7 = vector.load %arg5[%c0_5, %c0_6] : memref<32x128xbf16, #tpu.memory_space<vmem>>, vector<32x128xbf16>
    tpu.vector_store %arg5[%c0_5, %c0_6], %6 {strides = array<i32>} : memref<32x128xbf16, #tpu.memory_space<vmem>>, vector<32x128xbf16>,
    return
  }
  func.func @transform_0(%arg0: i32, %arg1: i32) -> (i32, i32) {
    %c0_i32 = arith.constant 0 : i32
    %c0_i32_0 = arith.constant 0 : i32
    return %arg1, %c0_i32 : i32, i32
  }
  func.func @transform_1(%arg0: i32, %arg1: i32) -> (i32, i32) {
    %c0_i32 = arith.constant 0 : i32
    %c0_i32_0 = arith.constant 0 : i32
    return %c0_i32, %arg0 : i32, i32
  }
  func.func @transform_2(%arg0: i32, %arg1: i32) -> (i32, i32) {
    %c0_i32 = arith.constant 0 : i32
    %c0_i32_0 = arith.constant 0 : i32
    return %c0_i32, %arg0 : i32, i32
  }
  func.func @transform_3(%arg0: i32, %arg1: i32) -> (i32, i32) {
    %c0_i32 = arith.constant 0 : i32
    return %arg1, %arg0 : i32, i32
  }
}

</mosaic_0001>

<llo_original>
// kernel: tpu_custom_call.1
$region0: #{tpu_custom_call.1}
  #allocation0 [shape = 'u32[]', space=smem, size = 0x4, offset = 0x4, fixed_abs, tag = 'smem constant byte address 0x4 - core index']
  #allocation1 [shape = 'u32[144,128]{1,0:T(1,128)}', space=vmem, size = 0x12000, scoped, tag = 'internal scratch']
  %s0 = inlined_call_operand.hbm [shape: bf16[32,256], index: 0, kind: input, shape index: {}]
  %s1 = inlined_call_operand.hbm [shape: bf16[256,256], index: 1, kind: input, shape index: {}]
  %s2 = inlined_call_operand.vmem [shape: f32[1,256], index: 2, kind: input, shape index: {}]
  %s3 = inlined_call_operand.hbm [shape: bf16[32,256], index: 3, kind: output, shape index: {}]
  %s4 = sld [smem:[#allocation0]]
  $region53: #{tpu_custom_call.1} parent=0
    _
  %s6 = ssub.s32 1, %s4
  %s7 = scalar_select 0, %s6, %s4
  $region1: #{tpu_custom_call.1} parent=0
    #allocation2 [shape = 'u8[16384]{0}', space=vmem, size = 0x4000, scoped, tag = 'input window, operand 0, single buffered']
    #allocation3 [shape = 's32[2]{0}', space=sflag, size = 0x8, scoped, tag = 'scoped memory for tpu_custom_call.1']
    #allocation4 [shape = 's32[2]{0}', space=sflag, size = 0x8, scoped, tag = 'scoped memory for tpu_custom_call.1']
    #allocation5 [shape = 'u8[131072]{0}', space=vmem, size = 0x20000, scoped, tag = 'input window, operand 1']
    #allocation6 [shape = 's32[2]{0}', space=sflag, size = 0x8, scoped, tag = 'scoped memory for tpu_custom_call.1']
    #allocation7 [shape = 'u8[16384]{0}', space=vmem, size = 0x4000, scoped, tag = 'output window, operand 0']
    %8 = vsyncpa [#allocation3], 0
    %9 = vsyncpa [#allocation6], 0
    %s10 = scalar_lea.sflag [#allocation6], 1
    %11 = vsyncpa %s10, 0
    %12 = vsyncpa [#allocation4], 0
    %s13 = scalar_lea.sflag [#allocation4], 1
    %14 = vsyncpa %s13, 0
    loop: start=0, step=1, limit=4
    $region2: #{tpu_custom_call.1} parent=1 // loop_pre_header
      _
    $region3: #{tpu_custom_call.1} parent=1 // loop_header
      %s16 = sphi 0, %s20
      %p17 = scmp.ge.s32.totalorder %s16, 4
      %s23 = sphi 0, %s35
      %s24 = sphi 0, %s31
      %s25 = sphi 0, %s23
      %s26 = sphi 0, %s24
      %s27 = sphi 0, %s25
      %s28 = sphi 0, %s26
      %s38 = sphi 0, %s40
      %s41 = sphi 0, %s38
      %s42 = sphi 0, %s41
      %s58 = sphi 0, %s42
      %s64 = sphi 0, %s66
      %s67 = sphi 0, %s64
      %s68 = sphi 0, %s67
      %s84 = sphi 0, %s68
      %s90 = sphi 0, %s92
      %s93 = sphi 0, %s90
      %s94 = sphi 0, %s93
      %s110 = sphi 0, %s94
      %s118 = sphi 0, %s120
      %s121 = sphi 0, %s118
      %s122 = sphi 0, %s121
      %s138 = sphi 0, %s122
    $region4: #{tpu_custom_call.1} parent=1 // loop_header_branch
      %19 = sbr.rel (%p17) target = $region8
    $region5: #{tpu_custom_call.1} parent=1 // loop_body
      %s21 = ssub.s32 %s16, 1
      %s22 = ssub.s32 %s16, 2
      %s29 = sadd.s32 1, %s24
      %p30 = scmp.ge.s32.totalorder %s29, 1
      %s31 = scalar_select %p30, 0, %s29
      %s32 = sadd.s32 1, %s23
      %s33 = scalar_select %p30, %s32, %s23
      %p34 = scmp.ge.s32.totalorder %s33, 2
      %s35 = scalar_select %p34, 0, %s33
      %s36 = ssub.s32 %s24, %s31
      %p37 = scmp.eq.s32.totalorder %s36, 0
      %s39 = sadd.s32 %s38, 1
      %s40 = scalar_select %p37, %s38, %s39
      %p43 = pneg %p37
      %p44 = scmp.eq.s32.totalorder %s16, 1
      %p45 = por %p43, %p44
      %p46 = scmp.ne.s32.totalorder %s38, %s41
      %p47 = scmp.eq.s32.totalorder %s16, 0
      %p48 = por %p46, %p47
      %p49 = scmp.ne.s32.totalorder %s38, %s41
      %p50 = scmp.eq.s32.totalorder %s21, 1
      %p51 = por %p49, %p50
      %p52 = scmp.ne.s32.totalorder %s41, %s42
      %p53 = scmp.eq.s32.totalorder %s21, 0
      %p54 = por %p52, %p53
      %p55 = scmp.ne.s32.totalorder %s41, %s42
      %p56 = scmp.eq.s32.totalorder %s22, 1
      %p57 = por %p55, %p56
      %p59 = scmp.ne.s32.totalorder %s42, %s58
      %p60 = scmp.eq.s32.totalorder %s22, 0
      %p61 = por %p59, %p60
      %s62 = ssub.s32 %s23, %s35
      %p63 = scmp.eq.s32.totalorder %s62, 0
      %s65 = sadd.s32 %s64, 1
      %s66 = scalar_select %p63, %s64, %s65
      %p69 = pneg %p63
      %p70 = scmp.eq.s32.totalorder %s16, 1
      %p71 = por %p69, %p70
      %p72 = scmp.ne.s32.totalorder %s64, %s67
      %p73 = scmp.eq.s32.totalorder %s16, 0
      %p74 = por %p72, %p73
      %p75 = scmp.ne.s32.totalorder %s64, %s67
      %p76 = scmp.eq.s32.totalorder %s21, 1
      %p77 = por %p75, %p76
      %p78 = scmp.ne.s32.totalorder %s67, %s68
      %p79 = scmp.eq.s32.totalorder %s21, 0
      %p80 = por %p78, %p79
      %p81 = scmp.ne.s32.totalorder %s67, %s68
      %p82 = scmp.eq.s32.totalorder %s22, 1
      %p83 = por %p81, %p82
      %p85 = scmp.ne.s32.totalorder %s68, %s84
      %p86 = scmp.eq.s32.totalorder %s22, 0
      %p87 = por %p85, %p86
      %s88 = ssub.s32 %s23, %s35
      %p89 = scmp.eq.s32.totalorder %s88, 0
      %s91 = sadd.s32 %s90, 1
      %s92 = scalar_select %p89, %s90, %s91
      %p95 = pneg %p89
      %p96 = scmp.eq.s32.totalorder %s16, 1
      %p97 = por %p95, %p96
      %p98 = scmp.ne.s32.totalorder %s90, %s93
      %p99 = scmp.eq.s32.totalorder %s16, 0
      %p100 = por %p98, %p99
      %p101 = scmp.ne.s32.totalorder %s90, %s93
      %p102 = scmp.eq.s32.totalorder %s21, 1
      %p103 = por %p101, %p102
      %p104 = scmp.ne.s32.totalorder %s93, %s94
      %p105 = scmp.eq.s32.totalorder %s21, 0
      %p106 = por %p104, %p105
      %p107 = scmp.ne.s32.totalorder %s93, %s94
      %p108 = scmp.eq.s32.totalorder %s22, 1
      %p109 = por %p107, %p108
      %p111 = scmp.ne.s32.totalorder %s94, %s110
      %p112 = scmp.eq.s32.totalorder %s22, 0
      %p113 = por %p111, %p112
      %s114 = ssub.s32 %s24, %s31
      %s115 = ssub.s32 %s23, %s35
      %s116 = sor.u32 %s114, %s115
      %p117 = scmp.eq.s32.totalorder %s116, 0
      %s119 = sadd.s32 %s118, 1
      %s120 = scalar_select %p117, %s118, %s119
      %p123 = pneg %p117
      %p124 = scmp.eq.s32.totalorder %s16, 1
      %p125 = por %p123, %p124
      %p126 = scmp.ne.s32.totalorder %s118, %s121
      %p127 = scmp.eq.s32.totalorder %s16, 0
      %p128 = por %p126, %p127
      %p129 = scmp.ne.s32.totalorder %s118, %s121
      %p130 = scmp.eq.s32.totalorder %s21, 1
      %p131 = por %p129, %p130
      %p132 = scmp.ne.s32.totalorder %s121, %s122
      %p133 = scmp.eq.s32.totalorder %s21, 0
      %p134 = por %p132, %p133
      %p135 = scmp.ne.s32.totalorder %s121, %s122
      %p136 = scmp.eq.s32.totalorder %s22, 1
      %p137 = por %p135, %p136
      %p139 = scmp.ne.s32.totalorder %s122, %s138
      %p140 = scmp.eq.s32.totalorder %s22, 0
      %p141 = por %p139, %p140
      %p142 = scmp.le.s32.totalorder 1, %s16
      %p143 = scmp.lt.s32.totalorder %s16, 3
      %p144 = pnand %p142, %p143
      %p145 = pneg %p144
      // Predicated region
      $region9: #{tpu_custom_call.1} parent=5 // pred_check
        _
      $region10: #{tpu_custom_call.1} parent=5 // pred_check_branch
        %147 = sbr.rel (%p144) target = $region12
      $region11: #{tpu_custom_call.1} parent=5 // pred_region
        %s148 = ssub.s32 %s16, 1
        // Predicated region
        $region13: #{tpu_custom_call.1} parent=11 // pred_check
          %p149 = pneg %p54
        $region14: #{tpu_custom_call.1} parent=11 // pred_check_branch
          %151 = sbr.rel (%p149) target = $region16
        $region15: #{tpu_custom_call.1} parent=11 // pred_region
          %s152 = smul.u32 4, %s26
          %s154 = ssub.s32 512, 512
          %155 = vsyncadd [#allocation3], %s154
          %s156 = smul.addr %s152, 2
          %s157 = smul.addr %s156, 64
          %s158 = scalar_lea.hbm %s0, %s157
          %s159 = sshll.u32 [#allocation2], 4
          %s160 = int_to_ptr.vmem [resolvable:$true] %s159
          %165 = dma.hbm_to_vmem [thread:$0]  %s158, 512, %s160, [#allocation3], 128, 128, 8
        $region16: #{tpu_custom_call.1} parent=11 // pred_fallthru
          _
      $region12: #{tpu_custom_call.1} parent=5 // pred_fallthru
        _
      %p166 = scmp.lt.s32.totalorder %s16, 2
      // Predicated region
      $region17: #{tpu_custom_call.1} parent=5 // pred_check
        %p167 = pneg %p166
      $region18: #{tpu_custom_call.1} parent=5 // pred_check_branch
        %169 = sbr.rel (%p167) target = $region20
      $region19: #{tpu_custom_call.1} parent=5 // pred_region
        // Predicated region
        $region21: #{tpu_custom_call.1} parent=19 // pred_check
          %p170 = pneg %p74
        $region22: #{tpu_custom_call.1} parent=19 // pred_check_branch
          %172 = sbr.rel (%p170) target = $region24
        $region23: #{tpu_custom_call.1} parent=19 // pred_region
          %s173 = sand.u32 %s64, 1
          %s174 = scalar_lea.sflag [#allocation6], %s173
          %s175 = sand.u32 %s64, 1
          %s176 = smul.addr %s175, 128
          %s177 = scalar_lea.vmem [#allocation5], %s176
          %s179 = ssub.s32 2048, 2048
          %180 = vsyncadd %s174, %s179
          %s181 = smul.addr %s23, 64
          %s182 = scalar_lea.hbm %s1, %s181
          %s183 = sshll.u32 %s177, 4
          %s184 = int_to_ptr.vmem [resolvable:$true] %s183
          %189 = dma.hbm_to_vmem [thread:$0]  %s182, 2048, %s184, %s174, 128, 64, 4
        $region24: #{tpu_custom_call.1} parent=19 // pred_fallthru
          _
        // Predicated region
        $region25: #{tpu_custom_call.1} parent=19 // pred_check
          %p190 = pneg %p100
        $region26: #{tpu_custom_call.1} parent=19 // pred_check_branch
          %192 = sbr.rel (%p190) target = $region28
        $region27: #{tpu_custom_call.1} parent=19 // pred_region
          %p193 = scmp.lt.s32.totalorder %s23, 1
          %s194 = scalar_select %p193, %s23, 1
          %s195 = scalar_lea.vmem %s2, %s194
        $region28: #{tpu_custom_call.1} parent=19 // pred_fallthru
          _
      $region20: #{tpu_custom_call.1} parent=5 // pred_fallthru
        _
      %p196 = scmp.le.s32.totalorder 1, %s16
      %p197 = scmp.lt.s32.totalorder %s16, 3
      %p198 = pnand %p196, %p197
      %p199 = pneg %p198
      // Predicated region
      $region29: #{tpu_custom_call.1} parent=5 // pred_check
        _
      $region30: #{tpu_custom_call.1} parent=5 // pred_check_branch
        %201 = sbr.rel (%p198) target = $region32
      $region31: #{tpu_custom_call.1} parent=5 // pred_region
        %s202 = ssub.s32 %s16, 1
        // Predicated region
        $region33: #{tpu_custom_call.1} parent=31 // pred_check
          %p203 = pneg %p54
        $region34: #{tpu_custom_call.1} parent=31 // pred_check_branch
          %205 = sbr.rel (%p203) target = $region36
        $region35: #{tpu_custom_call.1} parent=31 // pred_region
          %206 = dma.done [#allocation3], 512
        $region36: #{tpu_custom_call.1} parent=31 // pred_fallthru
          _
        %s207 = sand.u32 %s67, 1
        %s208 = scalar_lea.sflag [#allocation6], %s207
        %s209 = sand.u32 %s67, 1
        %s210 = smul.addr %s209, 128
        %s211 = scalar_lea.vmem [#allocation5], %s210
        // Predicated region
        $region37: #{tpu_custom_call.1} parent=31 // pred_check
          %p212 = pneg %p80
        $region38: #{tpu_custom_call.1} parent=31 // pred_check_branch
          %214 = sbr.rel (%p212) target = $region40
        $region39: #{tpu_custom_call.1} parent=31 // pred_region
          %215 = dma.done %s208, 2048
        $region40: #{tpu_custom_call.1} parent=31 // pred_fallthru
          _
        %p216 = pneg %p54
        %p217 = pneg %p51
        %s218 = sand.u32 %s67, 1
        %s219 = scalar_lea.sflag [#allocation6], %s218
        %s220 = sand.u32 %s67, 1
        %s221 = smul.addr %s220, 128
        %s222 = scalar_lea.vmem [#allocation5], %s221
        %p223 = pneg %p80
        %p224 = pneg %p77
        %p225 = scmp.lt.s32.totalorder %s25, 1
        %s226 = scalar_select %p225, %s25, 1
        %s227 = scalar_lea.vmem %s2, %s226
        %p228 = pneg %p106
        %p229 = pneg %p103
        %p230 = pneg %p134
        %p231 = pneg %p131
        %s232 = sand.u32 %s121, 1
        %s233 = scalar_lea.sflag [#allocation4], %s232
        %s234 = sand.u32 %s121, 1
        %s235 = smul.addr %s234, 16
        %s236 = scalar_lea.vmem [#allocation7], %s235
        %s237 = smul.u32 4, %s26
        %p238 = scmp.lt.s32.totalorder %s25, 1
        %s239 = scalar_select %p238, %s25, 1
        %s240 = scalar_lea.vmem %s2, %s239
        %s241 = smul.u32 4, %s26
        %v243 = vld [vmem:[#allocation2] sm:$0xff]
        %v244 = vld [vmem:[#allocation2 + $0x8] sm:$0xff]
        %v245 = vld [vmem:[#allocation2 + $0x10] sm:$0xff]
        %v246 = vld [vmem:[#allocation2 + $0x18] sm:$0xff]
        %v247 = vld [vmem:[%s211] sm:$0xf]
        %v248 = vld [vmem:[%s211 + $0x4] sm:$0xf]
        %v249 = vld [vmem:[%s211 + $0x8] sm:$0xf]
        %v250 = vld [vmem:[%s211 + $0xc] sm:$0xf]
        %v251 = vld [vmem:[%s211 + $0x10] sm:$0xf]
        %v252 = vld [vmem:[%s211 + $0x14] sm:$0xf]
        %v253 = vld [vmem:[%s211 + $0x18] sm:$0xf]
        %v254 = vld [vmem:[%s211 + $0x1c] sm:$0xf]
        %v255 = vld [vmem:[%s211 + $0x20] sm:$0xf]
        %v256 = vld [vmem:[%s211 + $0x24] sm:$0xf]
        %v257 = vld [vmem:[%s211 + $0x28] sm:$0xf]
        %v258 = vld [vmem:[%s211 + $0x2c] sm:$0xf]
        %v259 = vld [vmem:[%s211 + $0x30] sm:$0xf]
        %v260 = vld [vmem:[%s211 + $0x34] sm:$0xf]
        %v261 = vld [vmem:[%s211 + $0x38] sm:$0xf]
        %v262 = vld [vmem:[%s211 + $0x3c] sm:$0xf]
        %v263 = vld [vmem:[%s211 + $0x40] sm:$0xf]
        %v264 = vld [vmem:[%s211 + $0x44] sm:$0xf]
        %v265 = vld [vmem:[%s211 + $0x48] sm:$0xf]
        %v266 = vld [vmem:[%s211 + $0x4c] sm:$0xf]
        %v267 = vld [vmem:[%s211 + $0x50] sm:$0xf]
        %v268 = vld [vmem:[%s211 + $0x54] sm:$0xf]
        %v269 = vld [vmem:[%s211 + $0x58] sm:$0xf]
        %v270 = vld [vmem:[%s211 + $0x5c] sm:$0xf]
        %v271 = vld [vmem:[%s211 + $0x60] sm:$0xf]
        %v272 = vld [vmem:[%s211 + $0x64] sm:$0xf]
        %v273 = vld [vmem:[%s211 + $0x68] sm:$0xf]
        %v274 = vld [vmem:[%s211 + $0x6c] sm:$0xf]
        %v275 = vld [vmem:[%s211 + $0x70] sm:$0xf]
        %v276 = vld [vmem:[%s211 + $0x74] sm:$0xf]
        %v277 = vld [vmem:[%s211 + $0x78] sm:$0xf]
        %v278 = vld [vmem:[%s211 + $0x7c] sm:$0xf]
        %v279 = vld [vmem:[%s240] sm:$0x1]
        %v281 = vlaneseq
        %v282 = vshrl.u32 %v281, 7
        %v283 = vsub.s32 0, %v282
        %v284 = vrot.slane %v279, %v283
        %v290 = vunpack.c.l.b16 %v243
        %v291 = vunpack.c.h.b16 %v243
        %v292 = vunpack.c.l.b16 %v244
        %v293 = vunpack.c.h.b16 %v244
        %v294 = vunpack.c.l.b16 %v245
        %v295 = vunpack.c.h.b16 %v245
        %v296 = vunpack.c.l.b16 %v246
        %v297 = vunpack.c.h.b16 %v246
        %v298 = vpack.c.b16 %v292, %v290
        %v299 = vpack.c.b16 %v293, %v291
        %v300 = vpack.c.b16 %v296, %v294
        %v301 = vpack.c.b16 %v297, %v295
        %v338 = vunpack.c.l.b16 %v247
        %v339 = vunpack.c.l.b16 %v248
        %v340 = vunpack.c.l.b16 %v249
        %v341 = vunpack.c.l.b16 %v250
        %v342 = vunpack.c.l.b16 %v251
        %v343 = vunpack.c.l.b16 %v252
        %v344 = vunpack.c.l.b16 %v253
        %v345 = vunpack.c.l.b16 %v254
        %v346 = vunpack.c.l.b16 %v255
        %v347 = vunpack.c.l.b16 %v256
        %v348 = vunpack.c.l.b16 %v257
        %v349 = vunpack.c.l.b16 %v258
        %v350 = vunpack.c.l.b16 %v259
        %v351 = vunpack.c.l.b16 %v260
        %v352 = vunpack.c.l.b16 %v261
        %v353 = vunpack.c.l.b16 %v262
        %v354 = vunpack.c.l.b16 %v263
        %v355 = vunpack.c.l.b16 %v264
        %v356 = vunpack.c.l.b16 %v265
        %v357 = vunpack.c.l.b16 %v266
        %v358 = vunpack.c.l.b16 %v267
        %v359 = vunpack.c.l.b16 %v268
        %v360 = vunpack.c.l.b16 %v269
        %v361 = vunpack.c.l.b16 %v270
        %v362 = vunpack.c.l.b16 %v271
        %v363 = vunpack.c.l.b16 %v272
        %v364 = vunpack.c.l.b16 %v273
        %v365 = vunpack.c.l.b16 %v274
        %v366 = vunpack.c.l.b16 %v275
        %v367 = vunpack.c.l.b16 %v276
        %v368 = vunpack.c.l.b16 %v277
        %v369 = vunpack.c.l.b16 %v278
        %v370 = vpack.c.b16 %v339, %v338
        %v371 = vpack.c.b16 %v341, %v340
        %v372 = vpack.c.b16 %v343, %v342
        %v373 = vpack.c.b16 %v345, %v344
        %v374 = vpack.c.b16 %v347, %v346
        %v375 = vpack.c.b16 %v349, %v348
        %v376 = vpack.c.b16 %v351, %v350
        %v377 = vpack.c.b16 %v353, %v352
        %v378 = vpack.c.b16 %v355, %v354
        %v379 = vpack.c.b16 %v357, %v356
        %v380 = vpack.c.b16 %v359, %v358
        %v381 = vpack.c.b16 %v361, %v360
        %v382 = vpack.c.b16 %v363, %v362
        %v383 = vpack.c.b16 %v365, %v364
        %v384 = vpack.c.b16 %v367, %v366
        %v385 = vpack.c.b16 %v369, %v368
        %402 = vmatprep.subr.bf16.mxu0 0
        %403 = vmatpush1.bf16.msra.mxu0 %v370
        %404 = vmatprep.subr.bf16.mxu0 0
        %405 = vmatpush1.bf16.msra.mxu0 %v371
        %406 = vmatprep.subr.bf16.mxu0 0
        %407 = vmatpush1.bf16.msra.mxu0 %v372
        %408 = vmatprep.subr.bf16.mxu0 0
        %409 = vmatpush1.bf16.msra.mxu0 %v373
        %410 = vmatprep.subr.bf16.mxu0 0
        %411 = vmatpush1.bf16.msra.mxu0 %v374
        %412 = vmatprep.subr.bf16.mxu0 0
        %413 = vmatpush1.bf16.msra.mxu0 %v375
        %414 = vmatprep.subr.bf16.mxu0 0
        %415 = vmatpush1.bf16.msra.mxu0 %v376
        %416 = vmatprep.subr.bf16.mxu0 0
        %417 = vmatpush1.bf16.msra.mxu0 %v377
        %418 = vmatprep.subr.bf16.mxu0 0
        %419 = vmatpush1.bf16.msra.mxu0 %v378
        %420 = vmatprep.subr.bf16.mxu0 0
        %421 = vmatpush1.bf16.msra.mxu0 %v379
        %422 = vmatprep.subr.bf16.mxu0 0
        %423 = vmatpush1.bf16.msra.mxu0 %v380
        %424 = vmatprep.subr.bf16.mxu0 0
        %425 = vmatpush1.bf16.msra.mxu0 %v381
        %426 = vmatprep.subr.bf16.mxu0 0
        %427 = vmatpush1.bf16.msra.mxu0 %v382
        %428 = vmatprep.subr.bf16.mxu0 0
        %429 = vmatpush1.bf16.msra.mxu0 %v383
        %430 = vmatprep.subr.bf16.mxu0 0
        %431 = vmatpush1.bf16.msra.mxu0 %v384
        %432 = vmatprep.subr.bf16.mxu0 0
        %433 = vmatpush1.bf16.msra.mxu0 %v385
        %434 = vmatprep.mubr.bf16.mxu0 %v299
        %435 = vmatmul.mubr.bf16.gmra.mrb[0].mxu0 %v298
        %v436 = vpop.f32.mrb[0].mxu0
        %v437 = vadd.f32 %v284, %v436
        %v438 = vpop.f32.mrb[0].mxu0
        %v439 = vpop.f32.mrb[0].mxu0
        %v440 = vadd.f32 %v284, %v439
        %v441 = vpop.f32.mrb[0].mxu0
        %442 = vmatprep.mubr.bf16.mxu0 %v301
        %443 = vmatmul.mubr.bf16.gmra.mrb[0].mxu0 %v300
        %v444 = vpop.f32.mrb[0].mxu0
        %v445 = vadd.f32 %v284, %v444
        %v446 = vpop.f32.mrb[0].mxu0
        %v447 = vpop.f32.mrb[0].mxu0
        %v448 = vadd.f32 %v284, %v447
        %v449 = vpop.f32.mrb[0].mxu0
        %450 = vdwg.mxu0
        %v451 = vpack.c.bf16 %v440, %v437
        %v452 = vpack.c.bf16 %v448, %v445
        %v455 = vunpack.c.l.b16 %v451
        %v456 = vunpack.c.h.b16 %v451
        %v457 = vunpack.c.l.b16 %v452
        %v458 = vunpack.c.h.b16 %v452
        %v459 = vpack.c.b16 %v455, %v455
        %v460 = vpack.c.b16 %v456, %v456
        %v461 = vpack.c.b16 %v457, %v457
        %v462 = vpack.c.b16 %v458, %v458
        %467 = vst [vmem:[%s236] sm:$0xf] %v459
        %468 = vst [vmem:[%s236 + $0x4] sm:$0xf] %v460
        %469 = vst [vmem:[%s236 + $0x8] sm:$0xf] %v461
        %470 = vst [vmem:[%s236 + $0xc] sm:$0xf] %v462
        %s471 = sand.u32 %s121, 1
        %s472 = scalar_lea.sflag [#allocation4], %s471
        %s473 = sand.u32 %s121, 1
        %s474 = smul.addr %s473, 16
        %s475 = scalar_lea.vmem [#allocation7], %s474
        // Predicated region
        $region41: #{tpu_custom_call.1} parent=31 // pred_check
          %p476 = pneg %p131
        $region42: #{tpu_custom_call.1} parent=31 // pred_check_branch
          %478 = sbr.rel (%p476) target = $region44
        $region43: #{tpu_custom_call.1} parent=31 // pred_region
          %s479 = smul.u32 4, %s26
          %s481 = ssub.s32 256, 256
          %482 = vsyncadd %s472, %s481
          %s483 = smul.addr %s479, 2
          %s484 = sadd.s32 %s25, %s483
          %s485 = smul.addr %s484, 64
          %s486 = scalar_lea.hbm %s3, %s485
          %s487 = sshll.u32 %s475, 4
          %s488 = int_to_ptr.vmem [resolvable:$true] %s487
          %493 = dma.vmem_to_hbm [thread:$0]  %s488, 256, %s486, %s472, 64, 128, 4
        $region44: #{tpu_custom_call.1} parent=31 // pred_fallthru
          _
      $region32: #{tpu_custom_call.1} parent=5 // pred_fallthru
        _
      %p494 = scmp.le.s32.totalorder 2, %s16
      // Predicated region
      $region45: #{tpu_custom_call.1} parent=5 // pred_check
        %p495 = pneg %p494
      $region46: #{tpu_custom_call.1} parent=5 // pred_check_branch
        %497 = sbr.rel (%p495) target = $region48
      $region47: #{tpu_custom_call.1} parent=5 // pred_region
        %s498 = ssub.s32 %s16, 2
        // Predicated region
        $region49: #{tpu_custom_call.1} parent=47 // pred_check
          %p499 = pneg %p137
        $region50: #{tpu_custom_call.1} parent=47 // pred_check_branch
          %501 = sbr.rel (%p499) target = $region52
        $region51: #{tpu_custom_call.1} parent=47 // pred_region
          %s502 = sand.u32 %s122, 1
          %s503 = scalar_lea.sflag [#allocation4], %s502
          %s504 = sand.u32 %s122, 1
          %s505 = smul.addr %s504, 16
          %s506 = scalar_lea.vmem [#allocation7], %s505
          %507 = dma.done %s503, 256
        $region52: #{tpu_custom_call.1} parent=47 // pred_fallthru
          _
      $region48: #{tpu_custom_call.1} parent=5 // pred_fallthru
        _
    $region6: #{tpu_custom_call.1} parent=1 // loop_footer
      %s20 = sadd.s32 1, %s16
    $region7: #{tpu_custom_call.1} parent=1 // loop_footer_branch
      %15 = sbr.rel target = $region3
    $region8: #{tpu_custom_call.1} parent=1 // loop_exit
      _
    %508 = vsyncpa [#allocation3], 1
    %s509 = scalar_lea.sflag [#allocation3], 1
    %510 = vsyncpa %s509, 1
    %511 = vsyncpa [#allocation6], 1
    %s512 = scalar_lea.sflag [#allocation6], 1
    %513 = vsyncpa %s512, 1
    %514 = vsyncpa [#allocation4], 1
    %s515 = scalar_lea.sflag [#allocation4], 1
    %516 = vsyncpa %s515, 1

</llo_original>
